<compile_context>
chip_gen: v7x
topology: tpu7x:2x2x1
jax: 0.10.0
libtpu: 0.0.40
codegen_flags: <defaults>
</compile_context>

<pallas_src>
import functools

import jax
import jax.numpy as jnp
from jax.experimental import pallas as pl
from jax.experimental.pallas import tpu as pltpu


def _round_up(a: int, b: int) -> int:
    return (a + b - 1) // b * b


def _add_margin_kernel(x_ref, w_ref, label_ref, out_ref, *, s, m, tn, compute_dtype):
    x = x_ref[...]                                   # (tm, Dp) f32
    w = w_ref[...]                                   # (tn, Dp) f32
    label = label_ref[...]                           # (tm, 1)  int32

    eps2 = jnp.float32(1e-24)                        # (F.normalize eps=1e-12)^2

    # Per-row inverse L2 norms via rsqrt (EUP slot) — no divides, no full
    # normalized copy of x.
    inv_x = jax.lax.rsqrt(jnp.maximum(jnp.sum(x * x, axis=-1, keepdims=True), eps2))  # (tm,1)
    inv_w = jax.lax.rsqrt(jnp.maximum(jnp.sum(w * w, axis=-1, keepdims=True), eps2))  # (tn,1)

    # Fold the weight-row norm into the VMEM-resident weight tile (natural
    # sublane broadcast along lanes), then contract on D directly — no
    # transpose of w.  VALU work here overlaps with the MXU slot.
    w_n = (w * inv_w).astype(compute_dtype)
    x_c = x.astype(compute_dtype)
    raw = jax.lax.dot_general(
        x_c, w_n,
        dimension_numbers=(((1,), (1,)), ((), ())),
        preferred_element_type=jnp.float32,
    )                                                # (tm, tn)

    # Epilogue: fuse s with inv_x (single per-row rescale), then apply the
    # additive margin on the target column via compare + select against the
    # global class index of this tile.
    cos_s = raw * (jnp.float32(s) * inv_x)           # s * cosine
    col0 = pl.program_id(1) * tn                     # global class offset of this tile
    cols = col0 + jax.lax.broadcasted_iota(jnp.int32, raw.shape, 1)
    out_ref[...] = jnp.where(
        cols == label, cos_s - jnp.float32(s * m), cos_s
    ).astype(out_ref.dtype)


def add_margin_product(x, weight, label, *, s=30.0, m=0.4,
                       tile_b=None, tile_n=None, compute_dtype=jnp.float32):
    """x: (B, in_features) f32, weight: (out_features, in_features) f32,
    label: (B,) int. Returns (B, out_features) f32 logits."""
    B, D = x.shape
    N, D2 = weight.shape
    assert D == D2, "feature dims must match"

    # Lane-dense padding: D and N up to multiples of 128 (zero pad is exact).
    Dp = _round_up(max(D, 128), 128)
    tm = tile_b if tile_b is not None else min(128, _round_up(B, 8))
    tn = tile_n if tile_n is not None else min(512, _round_up(max(N, 128), 128))
    Bp = _round_up(B, tm)
    Np = _round_up(N, tn)

    x_p = jnp.pad(x.astype(jnp.float32), ((0, Bp - B), (0, Dp - D)))
    w_p = jnp.pad(weight.astype(jnp.float32), ((0, Np - N), (0, Dp - D)))
    lab_p = jnp.pad(label.astype(jnp.int32).reshape(B, 1), ((0, Bp - B), (0, 0)))

    grid = (Bp // tm, Np // tn)

    # Explicit VMEM budget: double-buffered x/w/label inputs + output tiles,
    # with generous headroom, capped well under v7x's 64 MiB physical VMEM.
    tile_bytes = 4 * (2 * (tm * Dp + tn * Dp + tm) + 2 * tm * tn)
    vmem_limit = int(min(max(4 * tile_bytes, 16 * 1024 * 1024), 48 * 1024 * 1024))

    # Advisory cost hint for the XLA scheduler around the custom call.
    cost = pl.CostEstimate(
        flops=2 * Bp * Np * Dp,
        transcendentals=0,
        bytes_accessed=4 * (Bp * Dp * (Np // tn)      # x streamed per class tile
                            + Np * Dp * (Bp // tm)    # w streamed per batch tile
                            + Bp * Np                 # output
                            + Bp),                    # labels
    )

    kernel = functools.partial(
        _add_margin_kernel, s=float(s), m=float(m), tn=tn, compute_dtype=compute_dtype
    )
    out_p = pl.pallas_call(
        kernel,
        out_shape=jax.ShapeDtypeStruct((Bp, Np), jnp.float32),
        grid=grid,
        in_specs=[
            pl.BlockSpec((tm, Dp), lambda i, j: (i, 0)),   # x tile
            # NOTE: bump to pipeline_mode=pl.Buffered(3) if the weight stream
            # shows exposed DMA at very large N.
            pl.BlockSpec((tn, Dp), lambda i, j: (j, 0)),   # weight tile
            pl.BlockSpec((tm, 1), lambda i, j: (i, 0)),    # label column (VMEM int32)
        ],
        out_specs=pl.BlockSpec((tm, tn), lambda i, j: (i, j)),
        compiler_params=pltpu.CompilerParams(
            dimension_semantics=("parallel", "parallel"),
            vmem_limit_bytes=vmem_limit,
        ),
        cost_estimate=cost,
    )(x_p, w_p, lab_p)
    return out_p[:B, :N]


def _reference(x, weight, label, s=30.0, m=0.4):
    eps = 1e-12
    xn = x / jnp.maximum(jnp.linalg.norm(x, axis=-1, keepdims=True), eps)
    wn = weight / jnp.maximum(jnp.linalg.norm(weight, axis=-1, keepdims=True), eps)
    cosine = xn @ wn.T
    one_hot = jax.nn.one_hot(label, weight.shape[0], dtype=jnp.float32)
    return s * (one_hot * (cosine - m) + (1.0 - one_hot) * cosine)


if __name__ == "__main__":
    key = jax.random.PRNGKey(0)
    s, m = 30.0, 0.4

    # --- Case 1: module-like small shapes (single grid step after padding) ---
    B, in_features, out_features = 8, 32, 16
    kx, kw, kl, k2 = jax.random.split(key, 4)
    x = jax.random.normal(kx, (B, in_features), dtype=jnp.float32)
    bound = (6.0 / (in_features + out_features)) ** 0.5      # xavier_uniform_
    weight = jax.random.uniform(
        kw, (out_features, in_features), dtype=jnp.float32, minval=-bound, maxval=bound
    )
    label = jax.random.randint(kl, (B,), 0, out_features, dtype=jnp.int32)

    out = jax.block_until_ready(add_margin_product(x, weight, label, s=s, m=m))
    ref = _reference(x, weight, label, s=s, m=m)
    assert out.shape == (B, out_features)
    assert jnp.allclose(out, ref, atol=1e-4, rtol=1e-4), "case 1 mismatch vs reference"

    # --- Case 2: exercises the (batch, class) grid, padding, and the global
    #     class-index margin offset across multiple class tiles ---
    B2, D2, N2 = 24, 40, 300
    k2x, k2w, k2l = jax.random.split(k2, 3)
    x2 = jax.random.normal(k2x, (B2, D2), dtype=jnp.float32)
    bound2 = (6.0 / (D2 + N2)) ** 0.5
    w2 = jax.random.uniform(k2w, (N2, D2), dtype=jnp.float32, minval=-bound2, maxval=bound2)
    lab2 = jax.random.randint(k2l, (B2,), 0, N2, dtype=jnp.int32)

    out2 = jax.block_until_ready(
        add_margin_product(x2, w2, lab2, s=s, m=m, tile_b=8, tile_n=128)
    )
    ref2 = _reference(x2, w2, lab2, s=s, m=m)
    assert out2.shape == (B2, N2)
    assert jnp.allclose(out2, ref2, atol=1e-4, rtol=1e-4), "case 2 mismatch vs reference"

    print("KERNEL_OK")
</pallas_src>

<mosaic_0001>
module attributes {stable_mosaic.version = 11 : i64} {
  func.func @_add_margin_kernel(%arg0: i32, %arg1: i32, %arg2: memref<8x128xf32, #tpu.memory_space<vmem>>, %arg3: memref<128x128xf32, #tpu.memory_space<vmem>>, %arg4: memref<8x1xi32, #tpu.memory_space<vmem>>, %arg5: memref<8x128xf32, #tpu.memory_space<vmem>>) attributes {dimension_semantics = [#tpu.dimension_semantics<parallel>, #tpu.dimension_semantics<parallel>], iteration_bounds = array<i64: 1, 1>, scalar_prefetch = 0 : i64, scratch_operands = 0 : i64, tpu.core_type = #tpu.core_type<tc>, window_params = [{transform_indices = @transform_0, window_bounds = array<i64: 8, 128>}, {transform_indices = @transform_1, window_bounds = array<i64: 128, 128>}, {transform_indices = @transform_2, window_bounds = array<i64: 8, 1>}, {transform_indices = @transform_3, window_bounds = array<i64: 8, 128>}]} {
    %c0 = arith.constant 0 : index
    %c0_0 = arith.constant 0 : index
    %0 = vector.load %arg2[%c0, %c0_0] : memref<8x128xf32, #tpu.memory_space<vmem>>, vector<8x128xf32>
    %c0_1 = arith.constant 0 : index
    %c0_2 = arith.constant 0 : index
    %1 = vector.load %arg3[%c0_1, %c0_2] : memref<128x128xf32, #tpu.memory_space<vmem>>, vector<128x128xf32>
    %c0_3 = arith.constant 0 : index
    %c0_4 = arith.constant 0 : index
    %2 = vector.load %arg4[%c0_3, %c0_4] : memref<8x1xi32, #tpu.memory_space<vmem>>, vector<8x1xi32>
    %3 = arith.mulf %0, %0 : vector<8x128xf32>
    %cst = arith.constant dense<0.000000e+00> : vector<8xf32>
    %4 = vector.multi_reduction <add>, %3, %cst [1] : vector<8x128xf32> to vector<8xf32>
    %5 = vector.shape_cast %4 : vector<8xf32> to vector<8x1xf32>
    %cst_5 = arith.constant 1.000000e-24 : f32
    %6 = vector.broadcast %cst_5 : f32 to vector<8x1xf32>
    %7 = arith.maximumf %5, %6 : vector<8x1xf32>
    %8 = math.rsqrt %7 : vector<8x1xf32>
    %9 = arith.mulf %1, %1 : vector<128x128xf32>
    %cst_6 = arith.constant dense<0.000000e+00> : vector<128xf32>
    %10 = vector.multi_reduction <add>, %9, %cst_6 [1] : vector<128x128xf32> to vector<128xf32>
    %11 = vector.shape_cast %10 : vector<128xf32> to vector<128x1xf32>
    %cst_7 = arith.constant 1.000000e-24 : f32
    %12 = vector.broadcast %cst_7 : f32 to vector<128x1xf32>
    %13 = arith.maximumf %11, %12 : vector<128x1xf32>
    %14 = math.rsqrt %13 : vector<128x1xf32>
    %15 = vector.broadcast %14 : vector<128x1xf32> to vector<128x128xf32>
    %16 = arith.mulf %1, %15 : vector<128x128xf32>
    %cst_8 = arith.constant dense<0.000000e+00> : vector<8x128xf32>
    %17 = tpu.matmul %0, %16, %cst_8 {dimension_numbers = #tpu.dot_dimension_numbers<[1], [1], [0], [0], [0, 0, 1, 0], [], []>} : vector<8x128xf32>, vector<128x128xf32>, vector<8x128xf32> -> vector<8x128xf32>
    %cst_9 = arith.constant 3.000000e+01 : f32
    %18 = vector.broadcast %cst_9 : f32 to vector<8x1xf32>
    %19 = arith.mulf %18, %8 : vector<8x1xf32>
    %20 = vector.broadcast %19 : vector<8x1xf32> to vector<8x128xf32>
    %21 = arith.mulf %17, %20 : vector<8x128xf32>
    %c128_i32 = arith.constant 128 : i32
    %22 = arith.muli %arg1, %c128_i32 : i32
    %23 = tpu.iota {dimensions = array<i32: 1>} : vector<8x128xi32>
    %24 = vector.broadcast %22 : i32 to vector<8x128xi32>
    %25 = arith.addi %24, %23 : vector<8x128xi32>
    %26 = vector.broadcast %2 : vector<8x1xi32> to vector<8x128xi32>
    %27 = arith.cmpi eq, %25, %26 : vector<8x128xi32>
    %cst_10 = arith.constant 1.200000e+01 : f32
    %28 = vector.broadcast %cst_10 : f32 to vector<8x128xf32>
    %29 = arith.subf %21, %28 : vector<8x128xf32>
    %30 = arith.select %27, %29, %21 : vector<8x128xi1>, vector<8x128xf32>
    %c0_11 = arith.constant 0 : index
    %c0_12 = arith.constant 0 : index
    %31 = vector.load %arg5[%c0_11, %c0_12] : memref<8x128xf32, #tpu.memory_space<vmem>>, vector<8x128xf32>
    tpu.vector_store %arg5[%c0_11, %c0_12], %30 {strides = array<i32>} : memref<8x128xf32, #tpu.memory_space<vmem>>, vector<8x128xf32>,
    return
  }
  func.func @transform_0(%arg0: i32, %arg1: i32) -> (i32, i32) {
    %c0_i32 = arith.constant 0 : i32
    %c0_i32_0 = arith.constant 0 : i32
    return %arg0, %c0_i32 : i32, i32
  }
  func.func @transform_1(%arg0: i32, %arg1: i32) -> (i32, i32) {
    %c0_i32 = arith.constant 0 : i32
    %c0_i32_0 = arith.constant 0 : i32
    return %arg1, %c0_i32 : i32, i32
  }
  func.func @transform_2(%arg0: i32, %arg1: i32) -> (i32, i32) {
    %c0_i32 = arith.constant 0 : i32
    %c0_i32_0 = arith.constant 0 : i32
    return %arg0, %c0_i32 : i32, i32
  }
  func.func @transform_3(%arg0: i32, %arg1: i32) -> (i32, i32) {
    %c0_i32 = arith.constant 0 : i32
    return %arg0, %arg1 : i32, i32
  }
}

</mosaic_0001>

<llo_original>
// kernel: tpu_custom_call.1
$region0: #{tpu_custom_call.1}
  #allocation0 [shape = 'u32[]', space=smem, size = 0x4, offset = 0x4, fixed_abs, tag = 'smem constant byte address 0x4 - core index']
  #allocation1 [shape = 'u32[144,128]{1,0:T(1,128)}', space=vmem, size = 0x12000, scoped, tag = 'internal scratch']
  %s0 = inlined_call_operand.vmem [shape: f32[8,128], index: 0, kind: input, shape index: {}]
  %s1 = inlined_call_operand.hbm [shape: f32[128,128], index: 1, kind: input, shape index: {}]
  %s2 = inlined_call_operand.vmem [shape: s32[8,1], index: 2, kind: input, shape index: {}]
  %s3 = inlined_call_operand.hbm [shape: f32[8,128], index: 3, kind: output, shape index: {}]
  %s4 = sld [smem:[#allocation0]]
  $region26: #{tpu_custom_call.1} parent=0
    _
  %s6 = ssub.s32 1, %s4
  %s7 = scalar_select 0, %s6, %s4
  $region1: #{tpu_custom_call.1} parent=0
    #allocation2 [shape = 'u8[65536]{0}', space=vmem, size = 0x10000, scoped, tag = 'input window, operand 1, single buffered']
    #allocation3 [shape = 's32[1]{0}', space=sflag, size = 0x4, scoped, tag = 'scoped memory for tpu_custom_call.1']
    #allocation4 [shape = 's32[1]{0}', space=sflag, size = 0x4, scoped, tag = 'scoped memory for tpu_custom_call.1']
    #allocation5 [shape = 'u8[4096]{0}', space=vmem, size = 0x1000, scoped, tag = 'output window, operand 0, single buffered']
    %8 = vsyncpa [#allocation3], 0
    %9 = vsyncpa [#allocation4], 0
    // Predicated region
    $region2: #{tpu_custom_call.1} parent=1 // pred_check
      _
    $region3: #{tpu_custom_call.1} parent=1 // pred_check_branch
      %11 = sbr.rel (0) target = $region5
    $region4: #{tpu_custom_call.1} parent=1 // pred_region
      _
    $region5: #{tpu_custom_call.1} parent=1 // pred_fallthru
      _
    // Predicated region
    $region6: #{tpu_custom_call.1} parent=1 // pred_check
      _
    $region7: #{tpu_custom_call.1} parent=1 // pred_check_branch
      %13 = sbr.rel (0) target = $region9
    $region8: #{tpu_custom_call.1} parent=1 // pred_region
      %s15 = ssub.s32 2048, 2048
      %16 = vsyncadd [#allocation3], %s15
      %s17 = sshll.u32 [#allocation2], 4
      %s18 = int_to_ptr.vmem [resolvable:$true] %s17
      %23 = dma.hbm_to_vmem [thread:$0]  %s1, 2048, %s18, [#allocation3], 128, 128, 8
    $region9: #{tpu_custom_call.1} parent=1 // pred_fallthru
      _
    // Predicated region
    $region10: #{tpu_custom_call.1} parent=1 // pred_check
      _
    $region11: #{tpu_custom_call.1} parent=1 // pred_check_branch
      %25 = sbr.rel (0) target = $region13
    $region12: #{tpu_custom_call.1} parent=1 // pred_region
      _
    $region13: #{tpu_custom_call.1} parent=1 // pred_fallthru
      _
    // Predicated region
    $region14: #{tpu_custom_call.1} parent=1 // pred_check
      _
    $region15: #{tpu_custom_call.1} parent=1 // pred_check_branch
      %27 = sbr.rel (0) target = $region17
    $region16: #{tpu_custom_call.1} parent=1 // pred_region
      %28 = dma.done [#allocation3], 2048
    $region17: #{tpu_custom_call.1} parent=1 // pred_fallthru
      _
    %v29 = vld [vmem:[%s0] sm:$0xff]
    %v30 = vld [vmem:[#allocation2] sm:$0xff]
    %v31 = vld [vmem:[#allocation2 + $0x8] sm:$0xff]
    %v32 = vld [vmem:[#allocation2 + $0x10] sm:$0xff]
    %v33 = vld [vmem:[#allocation2 + $0x18] sm:$0xff]
    %v34 = vld [vmem:[#allocation2 + $0x20] sm:$0xff]
    %v35 = vld [vmem:[#allocation2 + $0x28] sm:$0xff]
    %v36 = vld [vmem:[#allocation2 + $0x30] sm:$0xff]
    %v37 = vld [vmem:[#allocation2 + $0x38] sm:$0xff]
    %v38 = vld [vmem:[#allocation2 + $0x40] sm:$0xff]
    %v39 = vld [vmem:[#allocation2 + $0x48] sm:$0xff]
    %v40 = vld [vmem:[#allocation2 + $0x50] sm:$0xff]
    %v41 = vld [vmem:[#allocation2 + $0x58] sm:$0xff]
    %v42 = vld [vmem:[#allocation2 + $0x60] sm:$0xff]
    %v43 = vld [vmem:[#allocation2 + $0x68] sm:$0xff]
    %v44 = vld [vmem:[#allocation2 + $0x70] sm:$0xff]
    %v45 = vld [vmem:[#allocation2 + $0x78] sm:$0xff]
    %v46 = vld [vmem:[%s2] sm:$0xff]
    %v47 = vmul.f32 %v29, %v29
    %48 = vadd.xlane.f32.xlu0 %v47
    %v49 = vpop.xlane.xlu0 %48
    %v50 = vmax.f32 %v49, 1e-24
    %v51 = vrsqrt.pop %v50
    %v52 = vmul.f32 %v30, %v30
    %v53 = vmul.f32 %v31, %v31
    %v54 = vmul.f32 %v32, %v32
    %v55 = vmul.f32 %v33, %v33
    %v56 = vmul.f32 %v34, %v34
    %v57 = vmul.f32 %v35, %v35
    %v58 = vmul.f32 %v36, %v36
    %v59 = vmul.f32 %v37, %v37
    %v60 = vmul.f32 %v38, %v38
    %v61 = vmul.f32 %v39, %v39
    %v62 = vmul.f32 %v40, %v40
    %v63 = vmul.f32 %v41, %v41
    %v64 = vmul.f32 %v42, %v42
    %v65 = vmul.f32 %v43, %v43
    %v66 = vmul.f32 %v44, %v44
    %v67 = vmul.f32 %v45, %v45
    %68 = vadd.xlane.f32.xlu0 %v52
    %v69 = vpop.xlane.xlu0 %68
    %70 = vadd.xlane.f32.xlu0 %v53
    %v71 = vpop.xlane.xlu0 %70
    %72 = vadd.xlane.f32.xlu0 %v54
    %v73 = vpop.xlane.xlu0 %72
    %74 = vadd.xlane.f32.xlu0 %v55
    %v75 = vpop.xlane.xlu0 %74
    %76 = vadd.xlane.f32.xlu0 %v56
    %v77 = vpop.xlane.xlu0 %76
    %78 = vadd.xlane.f32.xlu0 %v57
    %v79 = vpop.xlane.xlu0 %78
    %80 = vadd.xlane.f32.xlu0 %v58
    %v81 = vpop.xlane.xlu0 %80
    %82 = vadd.xlane.f32.xlu0 %v59
    %v83 = vpop.xlane.xlu0 %82
    %84 = vadd.xlane.f32.xlu0 %v60
    %v85 = vpop.xlane.xlu0 %84
    %86 = vadd.xlane.f32.xlu0 %v61
    %v87 = vpop.xlane.xlu0 %86
    %88 = vadd.xlane.f32.xlu0 %v62
    %v89 = vpop.xlane.xlu0 %88
    %90 = vadd.xlane.f32.xlu0 %v63
    %v91 = vpop.xlane.xlu0 %90
    %92 = vadd.xlane.f32.xlu0 %v64
    %v93 = vpop.xlane.xlu0 %92
    %94 = vadd.xlane.f32.xlu0 %v65
    %v95 = vpop.xlane.xlu0 %94
    %96 = vadd.xlane.f32.xlu0 %v66
    %v97 = vpop.xlane.xlu0 %96
    %98 = vadd.xlane.f32.xlu0 %v67
    %v99 = vpop.xlane.xlu0 %98
    %v100 = vmax.f32 %v69, 1e-24
    %v101 = vmax.f32 %v71, 1e-24
    %v102 = vmax.f32 %v73, 1e-24
    %v103 = vmax.f32 %v75, 1e-24
    %v104 = vmax.f32 %v77, 1e-24
    %v105 = vmax.f32 %v79, 1e-24
    %v106 = vmax.f32 %v81, 1e-24
    %v107 = vmax.f32 %v83, 1e-24
    %v108 = vmax.f32 %v85, 1e-24
    %v109 = vmax.f32 %v87, 1e-24
    %v110 = vmax.f32 %v89, 1e-24
    %v111 = vmax.f32 %v91, 1e-24
    %v112 = vmax.f32 %v93, 1e-24
    %v113 = vmax.f32 %v95, 1e-24
    %v114 = vmax.f32 %v97, 1e-24
    %v115 = vmax.f32 %v99, 1e-24
    %v116 = vrsqrt.pop %v100
    %v117 = vrsqrt.pop %v101
    %v118 = vrsqrt.pop %v102
    %v119 = vrsqrt.pop %v103
    %v120 = vrsqrt.pop %v104
    %v121 = vrsqrt.pop %v105
    %v122 = vrsqrt.pop %v106
    %v123 = vrsqrt.pop %v107
    %v124 = vrsqrt.pop %v108
    %v125 = vrsqrt.pop %v109
    %v126 = vrsqrt.pop %v110
    %v127 = vrsqrt.pop %v111
    %v128 = vrsqrt.pop %v112
    %v129 = vrsqrt.pop %v113
    %v130 = vrsqrt.pop %v114
    %v131 = vrsqrt.pop %v115
    %v132 = vmul.f32 %v30, %v116
    %v133 = vmul.f32 %v31, %v117
    %v134 = vmul.f32 %v32, %v118
    %v135 = vmul.f32 %v33, %v119
    %v136 = vmul.f32 %v34, %v120
    %v137 = vmul.f32 %v35, %v121
    %v138 = vmul.f32 %v36, %v122
    %v139 = vmul.f32 %v37, %v123
    %v140 = vmul.f32 %v38, %v124
    %v141 = vmul.f32 %v39, %v125
    %v142 = vmul.f32 %v40, %v126
    %v143 = vmul.f32 %v41, %v127
    %v144 = vmul.f32 %v42, %v128
    %v145 = vmul.f32 %v43, %v129
    %v146 = vmul.f32 %v44, %v130
    %v147 = vmul.f32 %v45, %v131
    %148 = vmatprep.subr.mxu0 0.0
    %149 = vmatpush1.xpose.msra.mxu0 %v132
    %150 = vmatprep.subr.mxu0 0.0
    %151 = vmatpush1.xpose.msra.mxu0 %v133
    %152 = vmatprep.subr.mxu0 0.0
    %153 = vmatpush1.xpose.msra.mxu0 %v134
    %154 = vmatprep.subr.mxu0 0.0
    %155 = vmatpush1.xpose.msra.mxu0 %v135
    %156 = vmatprep.subr.mxu0 0.0
    %157 = vmatpush1.xpose.msra.mxu0 %v136
    %158 = vmatprep.subr.mxu0 0.0
    %159 = vmatpush1.xpose.msra.mxu0 %v137
    %160 = vmatprep.subr.mxu0 0.0
    %161 = vmatpush1.xpose.msra.mxu0 %v138
    %162 = vmatprep.subr.mxu0 0.0
    %163 = vmatpush1.xpose.msra.mxu0 %v139
    %164 = vmatprep.subr.mxu0 0.0
    %165 = vmatpush1.xpose.msra.mxu0 %v140
    %166 = vmatprep.subr.mxu0 0.0
    %167 = vmatpush1.xpose.msra.mxu0 %v141
    %168 = vmatprep.subr.mxu0 0.0
    %169 = vmatpush1.xpose.msra.mxu0 %v142
    %170 = vmatprep.subr.mxu0 0.0
    %171 = vmatpush1.xpose.msra.mxu0 %v143
    %172 = vmatprep.subr.mxu0 0.0
    %173 = vmatpush1.xpose.msra.mxu0 %v144
    %174 = vmatprep.subr.mxu0 0.0
    %175 = vmatpush1.xpose.msra.mxu0 %v145
    %176 = vmatprep.subr.mxu0 0.0
    %177 = vmatpush1.xpose.msra.mxu0 %v146
    %178 = vmatprep.subr.mxu0 0.0
    %179 = vmatpush1.xpose.msra.mxu0 %v147
    %180 = vmatprep.subr.mxu0 0.0
    %181 = vmatpush1.xpose.msra.mxu0 0.0
    %182 = vmatprep.subr.mxu0 0.0
    %183 = vmatpush1.xpose.msra.mxu0 0.0
    %184 = vmatprep.subr.mxu0 0.0
    %185 = vmatpush1.xpose.msra.mxu0 0.0
    %186 = vmatprep.subr.mxu0 0.0
    %187 = vmatpush1.xpose.msra.mxu0 0.0
    %188 = vmatprep.subr.mxu0 0.0
    %189 = vmatpush1.xpose.msra.mxu0 0.0
    %190 = vmatprep.subr.mxu0 0.0
    %191 = vmatpush1.xpose.msra.mxu0 0.0
    %192 = vmatprep.subr.mxu0 0.0
    %193 = vmatpush1.xpose.msra.mxu0 0.0
    %194 = vmatprep.subr.mxu0 0.0
    %195 = vmatpush1.xpose.msra.mxu0 0.0
    %196 = vmatprep.subr.mxu0 0.0
    %197 = vmatpush1.xpose.msra.mxu0 0.0
    %198 = vmatprep.subr.mxu0 0.0
    %199 = vmatpush1.xpose.msra.mxu0 0.0
    %200 = vmatprep.subr.mxu0 0.0
    %201 = vmatpush1.xpose.msra.mxu0 0.0
    %202 = vmatprep.subr.mxu0 0.0
    %203 = vmatpush1.xpose.msra.mxu0 0.0
    %204 = vmatprep.subr.mxu0 0.0
    %205 = vmatpush1.xpose.msra.mxu0 0.0
    %206 = vmatprep.subr.mxu0 0.0
    %207 = vmatpush1.xpose.msra.mxu0 0.0
    %208 = vmatprep.subr.mxu0 0.0
    %209 = vmatpush1.xpose.msra.mxu0 0.0
    %210 = vmatprep.subr.mxu0 0.0
    %211 = vmatpush1.xpose.msra.mxu0 0.0
    %212 = vmatprep.mubr.f32.mxu0 0.0
    %213 = vmatmul.mubr.f32.gmra.mrb[0].mxu0 %v29
    %v214 = vpop.f32.mrb[0].mxu0
    %v215 = vadd.f32 0.0, %v214
    %v216 = vpop.f32.mrb[0].mxu0
    %217 = vdwg.mxu0
    %v218 = vmul.f32 %v51, 30.0
    %v219 = vmul.f32 %v215, %v218
    %s220 = smul.u32 0, 128
    %v221 = vlaneseq
    %v222 = vand.u32 %v221, 127
    %v223 = vstv %s220
    %v224 = vadd.s32 %v223, %v222
    %225 = vset.pattern.permute.xlu0 0
    %226 = vperm.xlu0 %225, %v46
    %v227 = vpop.permute.xlu0 %226
    %vm228 = vcmp.eq.s32.totalorder %v224, %v227
    %v229 = vsub.f32 %v219, 12.0
    %v230 = vsel %vm228, %v229, %v219
    %231 = vst [vmem:[#allocation5] sm:$0xff] %v230
    // Predicated region
    $region18: #{tpu_custom_call.1} parent=1 // pred_check
      _
    $region19: #{tpu_custom_call.1} parent=1 // pred_check_branch
      %233 = sbr.rel (0) target = $region21
    $region20: #{tpu_custom_call.1} parent=1 // pred_region
      %s235 = ssub.s32 128, 128
      %236 = vsyncadd [#allocation4], %s235
      %s238 = sshll.u32 [#allocation5], 4
      %s239 = int_to_ptr.vmem [resolvable:$true] %s238
      %241 = dma.vmem_to_hbm [thread:$0]  %s239, 128, %s3, [#allocation4]
    $region21: #{tpu_custom_call.1} parent=1 // pred_fallthru
      _
    // Predicated region
    $region22: #{tpu_custom_call.1} parent=1 // pred_check
      _
    $region23: #{tpu_custom_call.1} parent=1 // pred_check_branch
      %243 = sbr.rel (0) target = $region25
    $region24: #{tpu_custom_call.1} parent=1 // pred_region
      %244 = dma.done [#allocation4], 128
    $region25: #{tpu_custom_call.1} parent=1 // pred_fallthru
      _
    %245 = vsyncpa [#allocation3], 1
    %246 = vsyncpa [#allocation4], 1

</llo_original>
